<compile_context>
chip_gen: v7x
topology: tpu7x:2x2x1
jax: 0.10.0
libtpu: 0.0.40
codegen_flags: <defaults>
</compile_context>

<pallas_src>
import functools

import jax
import jax.numpy as jnp
from jax.experimental import pallas as pl
from jax.experimental.pallas import tpu as pltpu


def _round_up(v, m):
    return (v + m - 1) // m * m


def _swiglu_kernel(beta_ref, x_ref, w_ref, b_ref, o_ref, acc_ref, *, n_half):
    """Grid = (M tiles, K tiles). K is the reduction axis (last, 'arbitrary')."""
    k = pl.program_id(1)

    @pl.when(k == 0)
    def _init():
        acc_ref[...] = jnp.zeros_like(acc_ref)

    # One fused MXU pass over [x | Wg,W]: bf16 inputs, f32 accumulation.
    acc_ref[...] += jnp.dot(
        x_ref[...], w_ref[...], preferred_element_type=jnp.float32
    )

    @pl.when(k == pl.num_programs(1) - 1)
    def _epilogue():
        acc = acc_ref[...] + b_ref[...]          # (tm, 2*n_half), f32
        g = acc[:, :n_half]                      # gate projection
        lin = acc[:, n_half:]                    # linear projection
        beta = beta_ref[0]                       # scalar from SMEM
        swish_gate = g * jax.nn.sigmoid(beta * g)
        o_ref[...] = (swish_gate * lin).astype(o_ref.dtype)


@functools.partial(jax.jit, static_argnames=("tm", "tk", "compute_dtype"))
def swiglu(x, wg, bg, w, b, beta, *, tm=256, tk=512, compute_dtype=jnp.bfloat16):
    """x: [batch, seq, size]; wg/w: [size, size] (in, out); bg/b: [size]; beta: [1]."""
    batch, seq, size = x.shape
    m = batch * seq
    out_dtype = x.dtype

    # ---- TPU-friendly padded shapes -------------------------------------
    n_half = _round_up(size, 128)                # lanes per projection
    tm_eff = min(tm, _round_up(m, 16))           # bf16 sublane packing = 16
    m_pad = _round_up(m, tm_eff)
    tk_eff = min(tk, _round_up(size, 128))
    k_pad = _round_up(_round_up(size, 128), tk_eff)

    x2 = jnp.pad(x.reshape(m, size), ((0, m_pad - m), (0, k_pad - size)))
    wg_p = jnp.pad(wg, ((0, k_pad - size), (0, n_half - size)))
    w_p = jnp.pad(w, ((0, k_pad - size), (0, n_half - size)))
    wcat = jnp.concatenate([wg_p, w_p], axis=1)          # [k_pad, 2*n_half]
    bcat = jnp.concatenate(
        [jnp.pad(bg, (0, n_half - size)), jnp.pad(b, (0, n_half - size))]
    ).reshape(1, 2 * n_half).astype(jnp.float32)

    x2 = x2.astype(compute_dtype)
    wcat = wcat.astype(compute_dtype)
    beta_f32 = beta.astype(jnp.float32)

    grid = (m_pad // tm_eff, k_pad // tk_eff)

    # ---- scoped VMEM request (double-buffered inputs/outputs + scratch) --
    bpe = jnp.dtype(compute_dtype).itemsize
    est = (
        2 * tm_eff * tk_eff * bpe                       # x tiles
        + 2 * tk_eff * 2 * n_half * bpe                 # fused weight tiles
        + 2 * 2 * n_half * 4                            # bias
        + 2 * tm_eff * n_half * jnp.dtype(out_dtype).itemsize   # out tiles
        + tm_eff * 2 * n_half * 4                       # f32 accumulator
    )
    vmem_limit = min(100 << 20, max(32 << 20, int(1.25 * est)))

    kernel = functools.partial(_swiglu_kernel, n_half=n_half)

    out2 = pl.pallas_call(
        kernel,
        out_shape=jax.ShapeDtypeStruct((m_pad, n_half), out_dtype),
        grid_spec=pltpu.PrefetchScalarGridSpec(
            num_scalar_prefetch=1,                       # beta -> SMEM
            grid=grid,
            in_specs=[
                pl.BlockSpec((tm_eff, tk_eff), lambda i, k, beta: (i, k)),        # x
                pl.BlockSpec((tk_eff, 2 * n_half), lambda i, k, beta: (k, 0)),    # [Wg|W]
                pl.BlockSpec((1, 2 * n_half), lambda i, k, beta: (0, 0)),         # [bg|b]
            ],
            out_specs=pl.BlockSpec((tm_eff, n_half), lambda i, k, beta: (i, 0)),
            scratch_shapes=[pltpu.VMEM((tm_eff, 2 * n_half), jnp.float32)],
        ),
        compiler_params=pltpu.CompilerParams(
            dimension_semantics=("parallel", "arbitrary"),
            vmem_limit_bytes=vmem_limit,
        ),
    )(beta_f32, x2, wcat, bcat)

    return out2[:m, :size].reshape(batch, seq, size)


def _reference(x, wg, bg, w, b, beta, compute_dtype=jnp.float32):
    xc = x.astype(compute_dtype)
    g = jnp.einsum("bsd,de->bse", xc, wg.astype(compute_dtype),
                   preferred_element_type=jnp.float32) + bg
    lin = jnp.einsum("bsd,de->bse", xc, w.astype(compute_dtype),
                     preferred_element_type=jnp.float32) + b
    return (g * jax.nn.sigmoid(beta[0] * g)) * lin


if __name__ == "__main__":
    size = 32
    batch, seq = 2, 8

    key = jax.random.PRNGKey(0)
    kx, kwg, kbg, kw, kb = jax.random.split(key, 5)

    x = jax.random.normal(kx, (batch, seq, size), dtype=jnp.float32)
    # Deterministic parameter init (nn.Linear-ish scale); stored as [in, out].
    wg = jax.random.normal(kwg, (size, size), dtype=jnp.float32) / jnp.sqrt(size)
    bg = jax.random.normal(kbg, (size,), dtype=jnp.float32) * 0.01
    w = jax.random.normal(kw, (size, size), dtype=jnp.float32) / jnp.sqrt(size)
    b = jax.random.normal(kb, (size,), dtype=jnp.float32) * 0.01
    beta = jnp.ones((1,), dtype=jnp.float32)   # matches nn.Parameter(torch.ones(1))

    out = swiglu(x, wg, bg, w, b, beta)
    jax.block_until_ready(out)

    assert out.shape == (batch, seq, size)
    # Matched-precision reference (bf16 matmul inputs, f32 accumulation/epilogue).
    ref_bf16 = _reference(x, wg, bg, w, b, beta, compute_dtype=jnp.bfloat16)
    assert jnp.allclose(out, ref_bf16, atol=1e-3, rtol=1e-3), "mismatch vs bf16 reference"
    # Loose sanity check against the pure-f32 PyTorch-equivalent math.
    ref_f32 = _reference(x, wg, bg, w, b, beta, compute_dtype=jnp.float32)
    assert jnp.allclose(out, ref_f32, atol=1e-1, rtol=1e-1), "mismatch vs f32 reference"

    print("KERNEL_OK")
</pallas_src>

<mosaic_0001>
module attributes {stable_mosaic.version = 11 : i64} {
  func.func @_swiglu_kernel(%arg0: i32, %arg1: i32, %arg2: memref<1xf32, #tpu.memory_space<smem>>, %arg3: memref<16x128xbf16, #tpu.memory_space<vmem>>, %arg4: memref<128x256xbf16, #tpu.memory_space<vmem>>, %arg5: memref<1x256xf32, #tpu.memory_space<vmem>>, %arg6: memref<16x128xf32, #tpu.memory_space<vmem>>, %arg7: memref<16x256xf32, #tpu.memory_space<vmem>>) attributes {dimension_semantics = [#tpu.dimension_semantics<parallel>, #tpu.dimension_semantics<arbitrary>], iteration_bounds = array<i64: 1, 1>, scalar_prefetch = 1 : i64, scratch_operands = 1 : i64, tpu.core_type = #tpu.core_type<tc>, window_params = [{transform_indices = @transform_0, window_bounds = array<i64: 16, 128>}, {transform_indices = @transform_1, window_bounds = array<i64: 128, 256>}, {pipeline_mode = #tpu.pipeline_mode<synchronous>, transform_indices = @transform_2, window_bounds = array<i64: 1, 256>}, {transform_indices = @transform_3, window_bounds = array<i64: 16, 128>}]} {
    %c0_i32 = arith.constant 0 : i32
    %0 = arith.cmpi eq, %arg1, %c0_i32 : i32
    %1 = arith.extui %0 : i1 to i32
    %c0_i32_0 = arith.constant 0 : i32
    %2 = arith.cmpi ne, %1, %c0_i32_0 : i32
    scf.if %2 {
      %cst_10 = arith.constant 0.000000e+00 : f32
      %12 = vector.broadcast %cst_10 : f32 to vector<16x256xf32>
      %c0_11 = arith.constant 0 : index
      %c0_12 = arith.constant 0 : index
      %13 = vector.load %arg7[%c0_11, %c0_12] : memref<16x256xf32, #tpu.memory_space<vmem>>, vector<16x256xf32>
      tpu.vector_store %arg7[%c0_11, %c0_12], %12 {strides = array<i32>} : memref<16x256xf32, #tpu.memory_space<vmem>>, vector<16x256xf32>,
    } else {
    }
    %c0 = arith.constant 0 : index
    %c0_1 = arith.constant 0 : index
    %3 = vector.load %arg7[%c0, %c0_1] : memref<16x256xf32, #tpu.memory_space<vmem>>, vector<16x256xf32>
    %c0_2 = arith.constant 0 : index
    %c0_3 = arith.constant 0 : index
    %4 = vector.load %arg3[%c0_2, %c0_3] : memref<16x128xbf16, #tpu.memory_space<vmem>>, vector<16x128xbf16>
    %c0_4 = arith.constant 0 : index
    %c0_5 = arith.constant 0 : index
    %5 = vector.load %arg4[%c0_4, %c0_5] : memref<128x256xbf16, #tpu.memory_space<vmem>>, vector<128x256xbf16>
    %cst = arith.constant dense<0.000000e+00> : vector<16x256xf32>
    %6 = tpu.matmul %4, %5, %cst {dimension_numbers = #tpu.dot_dimension_numbers<[1], [0], [0], [1], [0, 0, 1, 1], [], []>} : vector<16x128xbf16>, vector<128x256xbf16>, vector<16x256xf32> -> vector<16x256xf32>
    %7 = arith.addf %3, %6 : vector<16x256xf32>
    %c0_6 = arith.constant 0 : index
    %c0_7 = arith.constant 0 : index
    %8 = vector.load %arg7[%c0_6, %c0_7] : memref<16x256xf32, #tpu.memory_space<vmem>>, vector<16x256xf32>
    tpu.vector_store %arg7[%c0_6, %c0_7], %7 {strides = array<i32>} : memref<16x256xf32, #tpu.memory_space<vmem>>, vector<16x256xf32>,
    %c0_i32_8 = arith.constant 0 : i32
    %9 = arith.cmpi eq, %arg1, %c0_i32_8 : i32
    %10 = arith.extui %9 : i1 to i32
    %c0_i32_9 = arith.constant 0 : i32
    %11 = arith.cmpi ne, %10, %c0_i32_9 : i32
    scf.if %11 {
      %c0_10 = arith.constant 0 : index
      %c0_11 = arith.constant 0 : index
      %12 = vector.load %arg7[%c0_10, %c0_11] : memref<16x256xf32, #tpu.memory_space<vmem>>, vector<16x256xf32>
      %c0_12 = arith.constant 0 : index
      %c0_13 = arith.constant 0 : index
      %13 = vector.load %arg5[%c0_12, %c0_13] : memref<1x256xf32, #tpu.memory_space<vmem>>, vector<1x256xf32>
      %14 = vector.broadcast %13 : vector<1x256xf32> to vector<16x256xf32>
      %15 = arith.addf %12, %14 : vector<16x256xf32>
      %16 = vector.extract_strided_slice %15 {offsets = [0, 0], sizes = [16, 128], strides = [1, 1]} : vector<16x256xf32> to vector<16x128xf32>
      %17 = vector.extract_strided_slice %15 {offsets = [0, 128], sizes = [16, 128], strides = [1, 1]} : vector<16x256xf32> to vector<16x128xf32>
      %c0_14 = arith.constant 0 : index
      %18 = memref.load %arg2[%c0_14] : memref<1xf32, #tpu.memory_space<smem>>
      %19 = vector.broadcast %18 : f32 to vector<16x128xf32>
      %20 = arith.mulf %19, %16 : vector<16x128xf32>
      %21 = arith.negf %20 : vector<16x128xf32>
      %22 = math.exp %21 : vector<16x128xf32>
      %cst_15 = arith.constant 1.000000e+00 : f32
      %23 = vector.broadcast %cst_15 : f32 to vector<16x128xf32>
      %24 = arith.addf %23, %22 : vector<16x128xf32>
      %25 = arith.divf %23, %24 : vector<16x128xf32>
      %26 = arith.mulf %16, %25 : vector<16x128xf32>
      %27 = arith.mulf %26, %17 : vector<16x128xf32>
      %c0_16 = arith.constant 0 : index
      %c0_17 = arith.constant 0 : index
      %28 = vector.load %arg6[%c0_16, %c0_17] : memref<16x128xf32, #tpu.memory_space<vmem>>, vector<16x128xf32>
      tpu.vector_store %arg6[%c0_16, %c0_17], %27 {strides = array<i32>} : memref<16x128xf32, #tpu.memory_space<vmem>>, vector<16x128xf32>,
    } else {
    }
    return
  }
  func.func @transform_0(%arg0: i32, %arg1: i32, %arg2: memref<1xf32, #tpu.memory_space<smem>>) -> (i32, i32) {
    %c0_i32 = arith.constant 0 : i32
    return %arg0, %arg1 : i32, i32
  }
  func.func @transform_1(%arg0: i32, %arg1: i32, %arg2: memref<1xf32, #tpu.memory_space<smem>>) -> (i32, i32) {
    %c0_i32 = arith.constant 0 : i32
    %c0_i32_0 = arith.constant 0 : i32
    return %arg1, %c0_i32 : i32, i32
  }
  func.func @transform_2(%arg0: i32, %arg1: i32, %arg2: memref<1xf32, #tpu.memory_space<smem>>) -> (i32, i32) {
    %c0_i32 = arith.constant 0 : i32
    %c0_i32_0 = arith.constant 0 : i32
    %c0_i32_1 = arith.constant 0 : i32
    return %c0_i32, %c0_i32_0 : i32, i32
  }
  func.func @transform_3(%arg0: i32, %arg1: i32, %arg2: memref<1xf32, #tpu.memory_space<smem>>) -> (i32, i32) {
    %c0_i32 = arith.constant 0 : i32
    %c0_i32_0 = arith.constant 0 : i32
    return %arg0, %c0_i32 : i32, i32
  }
}

</mosaic_0001>

<llo_original>
// kernel: swiglu.1
$region0: #{swiglu.1}
  #allocation0 [shape = 'u32[]', space=smem, size = 0x4, offset = 0x4, fixed_abs, tag = 'smem constant byte address 0x4 - core index']
  #allocation1 [shape = 'u32[144,128]{1,0:T(1,128)}', space=vmem, size = 0x12000, scoped, tag = 'internal scratch']
  #allocation2 [shape = 'f32[16,256]{1,0:T(8,128)}', space=vmem, size = 0x4000, scoped, tag = 'scratch operand']
  #allocation3 [shape = 's32[1]{0}', space=sflag, size = 0x4, scoped, tag = 'scoped memory for swiglu.1']
  #allocation4 [shape = 'f32[1]{0:T(128)S(6)}', space=smem, size = 0x200, scoped, tag = 'prefetched SMEM operand 0']
  %s0 = inlined_call_operand.<no memory space> [shape: f32[1], index: 0, kind: input, shape index: {}]
  %s1 = inlined_call_operand.vmem [shape: bf16[16,128], index: 1, kind: input, shape index: {}]
  %s2 = inlined_call_operand.vmem [shape: bf16[128,256], index: 2, kind: input, shape index: {}]
  %s3 = inlined_call_operand.vmem [shape: f32[1,256], index: 3, kind: input, shape index: {}]
  %s4 = inlined_call_operand.vmem [shape: f32[16,128], index: 4, kind: output, shape index: {}]
  %s5 = sld [smem:[#allocation0]]
  $region30: #{swiglu.1} parent=0
    _
  %s7 = ssub.s32 1, %s5
  %s8 = scalar_select 0, %s7, %s5
  %9 = sst [smem:[#allocation4]] %s0
  // Predicated region
  $region2: #{swiglu.1} parent=0 // pred_check
    _
  $region3: #{swiglu.1} parent=0 // pred_check_branch
    %11 = sbr.rel (0) target = $region5
  $region4: #{swiglu.1} parent=0 // pred_region
    _
  $region5: #{swiglu.1} parent=0 // pred_fallthru
    _
  // Predicated region
  $region6: #{swiglu.1} parent=0 // pred_check
    _
  $region7: #{swiglu.1} parent=0 // pred_check_branch
    %13 = sbr.rel (0) target = $region9
  $region8: #{swiglu.1} parent=0 // pred_region
    _
  $region9: #{swiglu.1} parent=0 // pred_fallthru
    _
  // Predicated region
  $region10: #{swiglu.1} parent=0 // pred_check
    _
  $region11: #{swiglu.1} parent=0 // pred_check_branch
    %15 = sbr.rel (0) target = $region13
  $region12: #{swiglu.1} parent=0 // pred_region
    _
  $region13: #{swiglu.1} parent=0 // pred_fallthru
    _
  %p17 = scmp.eq.s32.totalorder 0, 0
  // Predicated region
  $region14: #{swiglu.1} parent=0 // pred_check
    %p18 = pneg %p17
  $region15: #{swiglu.1} parent=0 // pred_check_branch
    %20 = sbr.rel (%p18) target = $region17
  $region16: #{swiglu.1} parent=0 // pred_region
    %21 = vst [vmem:[#allocation2] sm:$0xff] 0.0
    %22 = vst [vmem:[#allocation2 + $0x8] sm:$0xff] 0.0
    %23 = vst [vmem:[#allocation2 + $0x10] sm:$0xff] 0.0
    %24 = vst [vmem:[#allocation2 + $0x18] sm:$0xff] 0.0
  $region17: #{swiglu.1} parent=0 // pred_fallthru
    _
  %v25 = vld [vmem:[#allocation2] sm:$0xff]
  %v26 = vld [vmem:[#allocation2 + $0x8] sm:$0xff]
  %v27 = vld [vmem:[#allocation2 + $0x10] sm:$0xff]
  %v28 = vld [vmem:[#allocation2 + $0x18] sm:$0xff]
  %v29 = vld [vmem:[%s1] sm:$0xf]
  %v30 = vld [vmem:[%s1 + $0x4] sm:$0xf]
  %v31 = vld [vmem:[%s2] sm:$0xff]
  %v32 = vld [vmem:[%s2 + $0x8] sm:$0xff]
  %v33 = vld [vmem:[%s2 + $0x10] sm:$0xff]
  %v34 = vld [vmem:[%s2 + $0x18] sm:$0xff]
  %v35 = vld [vmem:[%s2 + $0x20] sm:$0xff]
  %v36 = vld [vmem:[%s2 + $0x28] sm:$0xff]
  %v37 = vld [vmem:[%s2 + $0x30] sm:$0xff]
  %v38 = vld [vmem:[%s2 + $0x38] sm:$0xff]
  %v39 = vld [vmem:[%s2 + $0x40] sm:$0xff]
  %v40 = vld [vmem:[%s2 + $0x48] sm:$0xff]
  %v41 = vld [vmem:[%s2 + $0x50] sm:$0xff]
  %v42 = vld [vmem:[%s2 + $0x58] sm:$0xff]
  %v43 = vld [vmem:[%s2 + $0x60] sm:$0xff]
  %v44 = vld [vmem:[%s2 + $0x68] sm:$0xff]
  %v45 = vld [vmem:[%s2 + $0x70] sm:$0xff]
  %v46 = vld [vmem:[%s2 + $0x78] sm:$0xff]
  %v49 = vunpack.c.l.b16 %v29
  %v50 = vunpack.c.l.b16 %v30
  %v51 = vpack.c.b16 %v50, %v49
  %v69 = vunpack.c.l.b16 %v31
  %v70 = vunpack.c.h.b16 %v31
  %v71 = vunpack.c.l.b16 %v32
  %v72 = vunpack.c.h.b16 %v32
  %v73 = vunpack.c.l.b16 %v33
  %v74 = vunpack.c.h.b16 %v33
  %v75 = vunpack.c.l.b16 %v34
  %v76 = vunpack.c.h.b16 %v34
  %v77 = vunpack.c.l.b16 %v35
  %v78 = vunpack.c.h.b16 %v35
  %v79 = vunpack.c.l.b16 %v36
  %v80 = vunpack.c.h.b16 %v36
  %v81 = vunpack.c.l.b16 %v37
  %v82 = vunpack.c.h.b16 %v37
  %v83 = vunpack.c.l.b16 %v38
  %v84 = vunpack.c.h.b16 %v38
  %v85 = vunpack.c.l.b16 %v39
  %v86 = vunpack.c.h.b16 %v39
  %v87 = vunpack.c.l.b16 %v40
  %v88 = vunpack.c.h.b16 %v40
  %v89 = vunpack.c.l.b16 %v41
  %v90 = vunpack.c.h.b16 %v41
  %v91 = vunpack.c.l.b16 %v42
  %v92 = vunpack.c.h.b16 %v42
  %v93 = vunpack.c.l.b16 %v43
  %v94 = vunpack.c.h.b16 %v43
  %v95 = vunpack.c.l.b16 %v44
  %v96 = vunpack.c.h.b16 %v44
  %v97 = vunpack.c.l.b16 %v45
  %v98 = vunpack.c.h.b16 %v45
  %v99 = vunpack.c.l.b16 %v46
  %v100 = vunpack.c.h.b16 %v46
  %v101 = vpack.c.b16 %v71, %v69
  %v102 = vpack.c.b16 %v72, %v70
  %v103 = vpack.c.b16 %v75, %v73
  %v104 = vpack.c.b16 %v76, %v74
  %v105 = vpack.c.b16 %v79, %v77
  %v106 = vpack.c.b16 %v80, %v78
  %v107 = vpack.c.b16 %v83, %v81
  %v108 = vpack.c.b16 %v84, %v82
  %v109 = vpack.c.b16 %v87, %v85
  %v110 = vpack.c.b16 %v88, %v86
  %v111 = vpack.c.b16 %v91, %v89
  %v112 = vpack.c.b16 %v92, %v90
  %v113 = vpack.c.b16 %v95, %v93
  %v114 = vpack.c.b16 %v96, %v94
  %v115 = vpack.c.b16 %v99, %v97
  %v116 = vpack.c.b16 %v100, %v98
  %133 = vmatprep.subr.bf16.mxu0 %v102
  %134 = vmatpush1.bf16.msra.mxu0 %v101
  %135 = vmatprep.subr.bf16.mxu0 %v104
  %136 = vmatpush1.bf16.msra.mxu0 %v103
  %137 = vmatprep.subr.bf16.mxu0 %v106
  %138 = vmatpush1.bf16.msra.mxu0 %v105
  %139 = vmatprep.subr.bf16.mxu0 %v108
  %140 = vmatpush1.bf16.msra.mxu0 %v107
  %141 = vmatprep.subr.bf16.mxu0 %v110
  %142 = vmatpush1.bf16.msra.mxu0 %v109
  %143 = vmatprep.subr.bf16.mxu0 %v112
  %144 = vmatpush1.bf16.msra.mxu0 %v111
  %145 = vmatprep.subr.bf16.mxu0 %v114
  %146 = vmatpush1.bf16.msra.mxu0 %v113
  %147 = vmatprep.subr.bf16.mxu0 %v116
  %148 = vmatpush1.bf16.msra.mxu0 %v115
  %149 = vmatprep.subr.bf16.mxu0 0
  %150 = vmatpush1.bf16.msra.mxu0 0
  %151 = vmatprep.subr.bf16.mxu0 0
  %152 = vmatpush1.bf16.msra.mxu0 0
  %153 = vmatprep.subr.bf16.mxu0 0
  %154 = vmatpush1.bf16.msra.mxu0 0
  %155 = vmatprep.subr.bf16.mxu0 0
  %156 = vmatpush1.bf16.msra.mxu0 0
  %157 = vmatprep.subr.bf16.mxu0 0
  %158 = vmatpush1.bf16.msra.mxu0 0
  %159 = vmatprep.subr.bf16.mxu0 0
  %160 = vmatpush1.bf16.msra.mxu0 0
  %161 = vmatprep.subr.bf16.mxu0 0
  %162 = vmatpush1.bf16.msra.mxu0 0
  %163 = vmatprep.subr.bf16.mxu0 0
  %164 = vmatpush1.bf16.msra.mxu0 0
  %165 = vmatprep.mubr.bf16.mxu0 0
  %166 = vmatmul.mubr.bf16.gmra.mrb[0].mxu0 %v51
  %v167 = vpop.f32.mrb[0].mxu0
  %v168 = vadd.f32 0.0, %v167
  %v169 = vpop.f32.mrb[0].mxu0
  %v170 = vadd.f32 0.0, %v169
  %v171 = vpop.f32.mrb[0].mxu0
  %v172 = vadd.f32 0.0, %v171
  %v173 = vpop.f32.mrb[0].mxu0
  %v174 = vadd.f32 0.0, %v173
  %175 = vdwg.mxu0
  %v176 = vadd.f32 %v25, %v168
  %v177 = vadd.f32 %v26, %v170
  %v178 = vadd.f32 %v27, %v172
  %v179 = vadd.f32 %v28, %v174
  %180 = vst [vmem:[#allocation2] sm:$0xff] %v176
  %181 = vst [vmem:[#allocation2 + $0x8] sm:$0xff] %v177
  %182 = vst [vmem:[#allocation2 + $0x10] sm:$0xff] %v178
  %183 = vst [vmem:[#allocation2 + $0x18] sm:$0xff] %v179
  // Predicated region
  $region18: #{swiglu.1} parent=0 // pred_check
    %p184 = pneg %p17
  $region19: #{swiglu.1} parent=0 // pred_check_branch
    %186 = sbr.rel (%p184) target = $region21
  $region20: #{swiglu.1} parent=0 // pred_region
    %v187 = vld [vmem:[#allocation2] sm:$0xff]
    %v188 = vld [vmem:[#allocation2 + $0x8] sm:$0xff]
    %v189 = vld [vmem:[#allocation2 + $0x10] sm:$0xff]
    %v190 = vld [vmem:[#allocation2 + $0x18] sm:$0xff]
    %v191 = vld [vmem:[%s3] sm:$0x3]
    %v193 = vlaneseq
    %v194 = vshrl.u32 %v193, 7
    %v195 = vsub.s32 0, %v194
    %v196 = vrot.slane %v191, %v195
    %v197 = vlaneseq
    %v198 = vshrl.u32 %v197, 7
    %v199 = vsub.s32 1, %v198
    %v200 = vrot.slane %v191, %v199
    %v203 = vadd.f32 %v187, %v196
    %v204 = vadd.f32 %v188, %v200
    %v205 = vadd.f32 %v189, %v196
    %v206 = vadd.f32 %v190, %v200
    %s207 = sld [smem:[#allocation4]]
    %v208 = vstv %s207
    %v209 = vmul.f32 %v208, %v203
    %v210 = vmul.f32 %v208, %v205
    %v211 = vxor.u32 %v209, 2147483648
    %v212 = vxor.u32 %v210, 2147483648
    %v213 = vmul.f32 %v211, 1.442695
    %v214 = vpow.pop %v213
    %v215 = vmul.f32 %v212, 1.442695
    %v216 = vpow.pop %v215
    %v217 = vadd.f32 %v214, 1.0
    %v218 = vadd.f32 %v216, 1.0
    %v219 = vrcp.pop %v217
    %v220 = vmul.f32 1.0, %v219
    %v221 = vrcp.pop %v218
    %v222 = vmul.f32 1.0, %v221
    %v223 = vmul.f32 %v203, %v220
    %v224 = vmul.f32 %v205, %v222
    %v225 = vmul.f32 %v223, %v204
    %v226 = vmul.f32 %v224, %v206
    %227 = vst [vmem:[%s4] sm:$0xff] %v225
    %228 = vst [vmem:[%s4 + $0x8] sm:$0xff] %v226
  $region21: #{swiglu.1} parent=0 // pred_fallthru
    _
  // Predicated region
  $region22: #{swiglu.1} parent=0 // pred_check
    _
  $region23: #{swiglu.1} parent=0 // pred_check_branch
    %230 = sbr.rel (0) target = $region25
  $region24: #{swiglu.1} parent=0 // pred_region
    _
  $region25: #{swiglu.1} parent=0 // pred_fallthru
    _
  // Predicated region
  $region26: #{swiglu.1} parent=0 // pred_check
    _
  $region27: #{swiglu.1} parent=0 // pred_check_branch
    %232 = sbr.rel (0) target = $region29
  $region28: #{swiglu.1} parent=0 // pred_region
    _
  $region29: #{swiglu.1} parent=0 // pred_fallthru
    _

</llo_original>
